<compile_context>
chip_gen: v7x
topology: tpu7x:2x2x1
jax: 0.10.0
libtpu: 0.0.40
codegen_flags: <defaults>
</compile_context>

<pallas_src>
import functools

import jax
import jax.numpy as jnp
from jax.experimental import pallas as pl
from jax.experimental.pallas import tpu as pltpu

HIDDEN_DIM = 512  # fc1 output width, fixed by the module


def _round_up(x, m):
    return ((x + m - 1) // m) * m


def _mlp_kernel(h1_ref, h2_ref, h3_ref, w1_ref, b1_ref, w2_ref, b2_ref, o_ref,
                *, hidden_size, split_k):
    """One batch tile: relu(cat(h1,h2,h3) @ w1 + b1) @ w2 + b2."""
    if split_k:
        # hidden_size >= 128: three MXU dots into one f32 accumulator,
        # no (TB, 3H) concat materialized in vregs.
        acc = jnp.dot(h1_ref[...], w1_ref[0:hidden_size, :],
                      preferred_element_type=jnp.float32)
        acc = acc + jnp.dot(h2_ref[...], w1_ref[hidden_size:2 * hidden_size, :],
                            preferred_element_type=jnp.float32)
        acc = acc + jnp.dot(h3_ref[...], w1_ref[2 * hidden_size:, :],
                            preferred_element_type=jnp.float32)
    else:
        # hidden_size < 128: one K=3H dot instead of three mostly-empty passes.
        x = jnp.concatenate([h1_ref[...], h2_ref[...], h3_ref[...]], axis=1)
        acc = jnp.dot(x, w1_ref[...], preferred_element_type=jnp.float32)

    # Bias + ReLU in f32 on the VPU (correct on v5e: no bf16 VPU there).
    acc = jnp.maximum(acc + b1_ref[...], 0.0)

    # fc2: bf16 x bf16 -> f32, lane-dense 128-wide output (unmasked vst).
    out = jnp.dot(acc.astype(jnp.bfloat16), w2_ref[...],
                  preferred_element_type=jnp.float32)
    o_ref[...] = (out + b2_ref[...]).astype(o_ref.dtype)


def global_model_forward(h1, h2, h3, params, *, num_classes):
    """Pallas forward pass for GlobalModel.

    h1, h2, h3 : (B, hidden_size) float (cast to bf16 on the wire)
    params     : dict from init_params (bf16 weights, f32 biases, padded fc2)
    num_classes: static int (logical output width)
    returns    : (B, num_classes) float32 logits
    """
    B, H = h1.shape
    n_pad = params["w2"].shape[1]  # 128-lane-padded fc2 output width

    # Batch tile: 256 fills the v6e/v7x MXU M-dim; tiny batches round to 16
    # (bf16 sublane packing).  v5e is also fine with these sizes.
    if B >= 256:
        tb = 256
    else:
        tb = _round_up(max(B, 1), 16)
    b_pad = _round_up(B, tb)

    def prep(h):
        h = h.astype(jnp.bfloat16)
        if b_pad != B:
            h = jnp.pad(h, ((0, b_pad - B), (0, 0)))
        return h

    h1p, h2p, h3p = prep(h1), prep(h2), prep(h3)

    kernel = functools.partial(_mlp_kernel, hidden_size=H, split_k=(H >= 128))

    flops = 2 * b_pad * (3 * H * HIDDEN_DIM + HIDDEN_DIM * n_pad)
    bytes_accessed = (
        3 * b_pad * H * 2                       # bf16 activation stream
        + 3 * H * HIDDEN_DIM * 2                # bf16 w1 (resident, read once)
        + HIDDEN_DIM * n_pad * 2                # bf16 w2
        + HIDDEN_DIM * 4 + n_pad * 4            # f32 biases
        + b_pad * n_pad * 4)                    # f32 output

    out_padded = pl.pallas_call(
        kernel,
        out_shape=jax.ShapeDtypeStruct((b_pad, n_pad), jnp.float32),
        grid=(b_pad // tb,),
        in_specs=[
            pl.BlockSpec((tb, H), lambda i: (i, 0)),            # h1 tile
            pl.BlockSpec((tb, H), lambda i: (i, 0)),            # h2 tile
            pl.BlockSpec((tb, H), lambda i: (i, 0)),            # h3 tile
            pl.BlockSpec((3 * H, HIDDEN_DIM), lambda i: (0, 0)),  # w1 (resident)
            pl.BlockSpec((1, HIDDEN_DIM), lambda i: (0, 0)),      # b1 (resident)
            pl.BlockSpec((HIDDEN_DIM, n_pad), lambda i: (0, 0)),  # w2 (resident)
            pl.BlockSpec((1, n_pad), lambda i: (0, 0)),           # b2 (resident)
        ],
        out_specs=pl.BlockSpec((tb, n_pad), lambda i: (i, 0)),
        compiler_params=pltpu.CompilerParams(
            dimension_semantics=("parallel",)),
        cost_estimate=pl.CostEstimate(
            flops=flops, transcendentals=0, bytes_accessed=bytes_accessed),
    )(h1p, h2p, h3p, params["w1"], params["b1"], params["w2"], params["b2"])

    # Layout-only slices back to the logical batch / class count (fuse under jit).
    return out_padded[:B, :num_classes]


def init_params(key, hidden_size, num_classes):
    """PyTorch-Linear-like init, stored in kernel-friendly layout:
       - w1 as one (3H, 512) bf16 array (kernel slices it statically if needed)
       - w2/b2 zero-padded to 128 output lanes, w2 in bf16
       - biases kept f32 as (1, N) rows."""
    input_size = hidden_size * 3
    n_pad = _round_up(num_classes, 128)

    k1, k2, k3, k4 = jax.random.split(key, 4)
    lim1 = 1.0 / jnp.sqrt(jnp.float32(input_size))
    lim2 = 1.0 / jnp.sqrt(jnp.float32(HIDDEN_DIM))

    w1 = jax.random.uniform(k1, (input_size, HIDDEN_DIM), jnp.float32, -lim1, lim1)
    b1 = jax.random.uniform(k2, (HIDDEN_DIM,), jnp.float32, -lim1, lim1)
    w2 = jax.random.uniform(k3, (HIDDEN_DIM, num_classes), jnp.float32, -lim2, lim2)
    b2 = jax.random.uniform(k4, (num_classes,), jnp.float32, -lim2, lim2)

    w2_pad = jnp.zeros((HIDDEN_DIM, n_pad), jnp.float32).at[:, :num_classes].set(w2)
    b2_pad = jnp.zeros((1, n_pad), jnp.float32).at[0, :num_classes].set(b2)

    # TODO(synk): on v7x only, fp8 weights (with per-channel scale folded into
    # the bias) would halve the remaining weight residency; kept bf16 here for
    # cross-generation portability.
    return {
        "w1": w1.astype(jnp.bfloat16),     # bf16 (3H, 512)
        "b1": b1.reshape(1, -1),           # f32  (1, 512)
        "w2": w2_pad.astype(jnp.bfloat16),  # bf16 (512, n_pad)
        "b2": b2_pad,                      # f32  (1, n_pad)
    }


if __name__ == "__main__":
    hidden_size = 32      # small demo size (module default is 256)
    num_classes = 10
    batch = 8

    key = jax.random.PRNGKey(0)
    kp, k1, k2, k3 = jax.random.split(key, 4)
    params = init_params(kp, hidden_size, num_classes)

    h1 = jax.random.normal(k1, (batch, hidden_size), jnp.float32)
    h2 = jax.random.normal(k2, (batch, hidden_size), jnp.float32)
    h3 = jax.random.normal(k3, (batch, hidden_size), jnp.float32)

    out = global_model_forward(h1, h2, h3, params, num_classes=num_classes)
    out = jax.block_until_ready(out)

    # Pure-JAX reference with the same bf16-rounded weights/activations and
    # f32 accumulation, matching the kernel's numerics (bf16 rounding means
    # the true f32 PyTorch model differs by ~1e-2-level relative error).
    x_bf = jnp.concatenate((h1, h2, h3), axis=1).astype(jnp.bfloat16)
    hid = jnp.maximum(
        jnp.dot(x_bf, params["w1"], preferred_element_type=jnp.float32)
        + params["b1"], 0.0)
    ref_full = (jnp.dot(hid.astype(jnp.bfloat16), params["w2"],
                        preferred_element_type=jnp.float32) + params["b2"])
    ref = ref_full[:, :num_classes]

    assert out.shape == (batch, num_classes)
    assert jnp.allclose(out, ref, atol=1e-3, rtol=1e-3)

    print("KERNEL_OK")
</pallas_src>

<mosaic_0001>
module attributes {stable_mosaic.version = 11 : i64} {
  func.func @_mlp_kernel(%arg0: i32, %arg1: memref<16x32xbf16, #tpu.memory_space<vmem>>, %arg2: memref<16x32xbf16, #tpu.memory_space<vmem>>, %arg3: memref<16x32xbf16, #tpu.memory_space<vmem>>, %arg4: memref<96x512xbf16, #tpu.memory_space<vmem>>, %arg5: memref<1x512xf32, #tpu.memory_space<vmem>>, %arg6: memref<512x128xbf16, #tpu.memory_space<vmem>>, %arg7: memref<1x128xf32, #tpu.memory_space<vmem>>, %arg8: memref<16x128xf32, #tpu.memory_space<vmem>>) attributes {dimension_semantics = [#tpu.dimension_semantics<parallel>], iteration_bounds = array<i64: 1>, scalar_prefetch = 0 : i64, scratch_operands = 0 : i64, tpu.core_type = #tpu.core_type<tc>, window_params = [{transform_indices = @transform_0, window_bounds = array<i64: 16, 32>}, {transform_indices = @transform_1, window_bounds = array<i64: 16, 32>}, {transform_indices = @transform_2, window_bounds = array<i64: 16, 32>}, {pipeline_mode = #tpu.pipeline_mode<synchronous>, transform_indices = @transform_3, window_bounds = array<i64: 96, 512>}, {pipeline_mode = #tpu.pipeline_mode<synchronous>, transform_indices = @transform_4, window_bounds = array<i64: 1, 512>}, {pipeline_mode = #tpu.pipeline_mode<synchronous>, transform_indices = @transform_5, window_bounds = array<i64: 512, 128>}, {pipeline_mode = #tpu.pipeline_mode<synchronous>, transform_indices = @transform_6, window_bounds = array<i64: 1, 128>}, {transform_indices = @transform_7, window_bounds = array<i64: 16, 128>}]} {
    %c0 = arith.constant 0 : index
    %c0_0 = arith.constant 0 : index
    %0 = vector.load %arg1[%c0, %c0_0] : memref<16x32xbf16, #tpu.memory_space<vmem>>, vector<16x32xbf16>
    %c0_1 = arith.constant 0 : index
    %c0_2 = arith.constant 0 : index
    %1 = vector.load %arg2[%c0_1, %c0_2] : memref<16x32xbf16, #tpu.memory_space<vmem>>, vector<16x32xbf16>
    %c0_3 = arith.constant 0 : index
    %c0_4 = arith.constant 0 : index
    %2 = vector.load %arg3[%c0_3, %c0_4] : memref<16x32xbf16, #tpu.memory_space<vmem>>, vector<16x32xbf16>
    %3 = tpu.concatenate %0, %1, %2 in 1 : vector<16x32xbf16>, vector<16x32xbf16>, vector<16x32xbf16> -> vector<16x96xbf16>
    %c0_5 = arith.constant 0 : index
    %c0_6 = arith.constant 0 : index
    %4 = vector.load %arg4[%c0_5, %c0_6] : memref<96x512xbf16, #tpu.memory_space<vmem>>, vector<96x512xbf16>
    %cst = arith.constant dense<0.000000e+00> : vector<16x512xf32>
    %5 = tpu.matmul %3, %4, %cst {dimension_numbers = #tpu.dot_dimension_numbers<[1], [0], [0], [1], [0, 0, 1, 1], [], []>} : vector<16x96xbf16>, vector<96x512xbf16>, vector<16x512xf32> -> vector<16x512xf32>
    %c0_7 = arith.constant 0 : index
    %c0_8 = arith.constant 0 : index
    %6 = vector.load %arg5[%c0_7, %c0_8] : memref<1x512xf32, #tpu.memory_space<vmem>>, vector<1x512xf32>
    %7 = vector.broadcast %6 : vector<1x512xf32> to vector<16x512xf32>
    %8 = arith.addf %5, %7 : vector<16x512xf32>
    %cst_9 = arith.constant 0.000000e+00 : f32
    %9 = vector.broadcast %cst_9 : f32 to vector<16x512xf32>
    %10 = arith.maximumf %8, %9 : vector<16x512xf32>
    %11 = arith.truncf %10 : vector<16x512xf32> to vector<16x512xbf16>
    %c0_10 = arith.constant 0 : index
    %c0_11 = arith.constant 0 : index
    %12 = vector.load %arg6[%c0_10, %c0_11] : memref<512x128xbf16, #tpu.memory_space<vmem>>, vector<512x128xbf16>
    %cst_12 = arith.constant dense<0.000000e+00> : vector<16x128xf32>
    %13 = tpu.matmul %11, %12, %cst_12 {dimension_numbers = #tpu.dot_dimension_numbers<[1], [0], [0], [1], [0, 0, 1, 1], [], []>} : vector<16x512xbf16>, vector<512x128xbf16>, vector<16x128xf32> -> vector<16x128xf32>
    %c0_13 = arith.constant 0 : index
    %c0_14 = arith.constant 0 : index
    %14 = vector.load %arg7[%c0_13, %c0_14] : memref<1x128xf32, #tpu.memory_space<vmem>>, vector<1x128xf32>
    %15 = vector.broadcast %14 : vector<1x128xf32> to vector<16x128xf32>
    %16 = arith.addf %13, %15 : vector<16x128xf32>
    %c0_15 = arith.constant 0 : index
    %c0_16 = arith.constant 0 : index
    %17 = vector.load %arg8[%c0_15, %c0_16] : memref<16x128xf32, #tpu.memory_space<vmem>>, vector<16x128xf32>
    tpu.vector_store %arg8[%c0_15, %c0_16], %16 {strides = array<i32>} : memref<16x128xf32, #tpu.memory_space<vmem>>, vector<16x128xf32>,
    return
  }
  func.func @transform_0(%arg0: i32) -> (i32, i32) {
    %c0_i32 = arith.constant 0 : i32
    %c0_i32_0 = arith.constant 0 : i32
    return %arg0, %c0_i32 : i32, i32
  }
  func.func @transform_1(%arg0: i32) -> (i32, i32) {
    %c0_i32 = arith.constant 0 : i32
    %c0_i32_0 = arith.constant 0 : i32
    return %arg0, %c0_i32 : i32, i32
  }
  func.func @transform_2(%arg0: i32) -> (i32, i32) {
    %c0_i32 = arith.constant 0 : i32
    %c0_i32_0 = arith.constant 0 : i32
    return %arg0, %c0_i32 : i32, i32
  }
  func.func @transform_3(%arg0: i32) -> (i32, i32) {
    %c0_i32 = arith.constant 0 : i32
    %c0_i32_0 = arith.constant 0 : i32
    %c0_i32_1 = arith.constant 0 : i32
    return %c0_i32, %c0_i32_0 : i32, i32
  }
  func.func @transform_4(%arg0: i32) -> (i32, i32) {
    %c0_i32 = arith.constant 0 : i32
    %c0_i32_0 = arith.constant 0 : i32
    %c0_i32_1 = arith.constant 0 : i32
    return %c0_i32, %c0_i32_0 : i32, i32
  }
  func.func @transform_5(%arg0: i32) -> (i32, i32) {
    %c0_i32 = arith.constant 0 : i32
    %c0_i32_0 = arith.constant 0 : i32
    %c0_i32_1 = arith.constant 0 : i32
    return %c0_i32, %c0_i32_0 : i32, i32
  }
  func.func @transform_6(%arg0: i32) -> (i32, i32) {
    %c0_i32 = arith.constant 0 : i32
    %c0_i32_0 = arith.constant 0 : i32
    %c0_i32_1 = arith.constant 0 : i32
    return %c0_i32, %c0_i32_0 : i32, i32
  }
  func.func @transform_7(%arg0: i32) -> (i32, i32) {
    %c0_i32 = arith.constant 0 : i32
    %c0_i32_0 = arith.constant 0 : i32
    return %arg0, %c0_i32 : i32, i32
  }
}

</mosaic_0001>

<llo_original>
// kernel: tpu_custom_call.1
$region0: #{tpu_custom_call.1}
  #allocation0 [shape = 'u32[]', space=smem, size = 0x4, offset = 0x4, fixed_abs, tag = 'smem constant byte address 0x4 - core index']
  #allocation1 [shape = 'u32[144,128]{1,0:T(1,128)}', space=vmem, size = 0x12000, scoped, tag = 'internal scratch']
  %s0 = inlined_call_operand.hbm [shape: bf16[16,32], index: 0, kind: input, shape index: {}]
  %s1 = inlined_call_operand.hbm [shape: bf16[16,32], index: 1, kind: input, shape index: {}]
  %s2 = inlined_call_operand.hbm [shape: bf16[16,32], index: 2, kind: input, shape index: {}]
  %s3 = inlined_call_operand.hbm [shape: bf16[96,512], index: 3, kind: input, shape index: {}]
  %s4 = inlined_call_operand.vmem [shape: f32[1,512], index: 4, kind: input, shape index: {}]
  %s5 = inlined_call_operand.hbm [shape: bf16[512,128], index: 5, kind: input, shape index: {}]
  %s6 = inlined_call_operand.vmem [shape: f32[1,128], index: 6, kind: input, shape index: {}]
  %s7 = inlined_call_operand.hbm [shape: f32[16,128], index: 7, kind: output, shape index: {}]
  %s8 = sld [smem:[#allocation0]]
  $region58: #{tpu_custom_call.1} parent=0
    _
  %s10 = ssub.s32 1, %s8
  %s11 = scalar_select 0, %s10, %s8
  $region1: #{tpu_custom_call.1} parent=0
    #allocation2 [shape = 'u8[4096]{0}', space=vmem, size = 0x1000, scoped, tag = 'input window, operand 0, single buffered']
    #allocation3 [shape = 's32[1]{0}', space=sflag, size = 0x4, scoped, tag = 'scoped memory for tpu_custom_call.1']
    #allocation4 [shape = 's32[1]{0}', space=sflag, size = 0x4, scoped, tag = 'scoped memory for tpu_custom_call.1']
    #allocation5 [shape = 'u8[4096]{0}', space=vmem, size = 0x1000, scoped, tag = 'input window, operand 1, single buffered']
    #allocation6 [shape = 's32[1]{0}', space=sflag, size = 0x4, scoped, tag = 'scoped memory for tpu_custom_call.1']
    #allocation7 [shape = 'u8[4096]{0}', space=vmem, size = 0x1000, scoped, tag = 'input window, operand 2, single buffered']
    #allocation8 [shape = 'u8[98304]{0}', space=vmem, size = 0x18000, scoped, tag = 'input window, operand 3, single buffered']
    #allocation9 [shape = 's32[1]{0}', space=sflag, size = 0x4, scoped, tag = 'scoped memory for tpu_custom_call.1']
    #allocation10 [shape = 'u8[131072]{0}', space=vmem, size = 0x20000, scoped, tag = 'input window, operand 5, single buffered']
    #allocation11 [shape = 'u8[8192]{0}', space=vmem, size = 0x2000, scoped, tag = 'output window, operand 0, single buffered']
    %12 = vsyncpa [#allocation3], 0
    %13 = vsyncpa [#allocation6], 0
    %14 = vsyncpa [#allocation9], 0
    %15 = vsyncpa [#allocation4], 0
    // Predicated region
    $region2: #{tpu_custom_call.1} parent=1 // pred_check
      _
    $region3: #{tpu_custom_call.1} parent=1 // pred_check_branch
      %17 = sbr.rel (0) target = $region5
    $region4: #{tpu_custom_call.1} parent=1 // pred_region
      %s19 = ssub.s32 128, 128
      %20 = vsyncadd [#allocation3], %s19
      %s21 = sshll.u32 [#allocation2], 4
      %s22 = int_to_ptr.vmem [resolvable:$true] %s21
      %27 = dma.hbm_to_vmem [thread:$0]  %s0, 128, %s22, [#allocation3], 64, 64, 4
    $region5: #{tpu_custom_call.1} parent=1 // pred_fallthru
      _
    // Predicated region
    $region6: #{tpu_custom_call.1} parent=1 // pred_check
      _
    $region7: #{tpu_custom_call.1} parent=1 // pred_check_branch
      %29 = sbr.rel (0) target = $region9
    $region8: #{tpu_custom_call.1} parent=1 // pred_region
      %s31 = ssub.s32 128, 128
      %32 = vsyncadd [#allocation6], %s31
      %s33 = sshll.u32 [#allocation5], 4
      %s34 = int_to_ptr.vmem [resolvable:$true] %s33
      %39 = dma.hbm_to_vmem [thread:$0]  %s1, 128, %s34, [#allocation6], 64, 64, 4
    $region9: #{tpu_custom_call.1} parent=1 // pred_fallthru
      _
    // Predicated region
    $region10: #{tpu_custom_call.1} parent=1 // pred_check
      _
    $region11: #{tpu_custom_call.1} parent=1 // pred_check_branch
      %41 = sbr.rel (0) target = $region13
    $region12: #{tpu_custom_call.1} parent=1 // pred_region
      %s43 = ssub.s32 128, 128
      %44 = vsyncadd [#allocation6], %s43
      %s45 = sshll.u32 [#allocation7], 4
      %s46 = int_to_ptr.vmem [resolvable:$true] %s45
      %51 = dma.hbm_to_vmem [thread:$0]  %s2, 128, %s46, [#allocation6], 64, 64, 4
    $region13: #{tpu_custom_call.1} parent=1 // pred_fallthru
      _
    // Predicated region
    $region14: #{tpu_custom_call.1} parent=1 // pred_check
      _
    $region15: #{tpu_custom_call.1} parent=1 // pred_check_branch
      %53 = sbr.rel (0) target = $region17
    $region16: #{tpu_custom_call.1} parent=1 // pred_region
      %s55 = ssub.s32 3072, 3072
      %56 = vsyncadd [#allocation9], %s55
      %s57 = sshll.u32 [#allocation8], 4
      %s58 = int_to_ptr.vmem [resolvable:$true] %s57
      %63 = dma.hbm_to_vmem [thread:$0]  %s3, 3072, %s58, [#allocation9], 256, 256, 16
    $region17: #{tpu_custom_call.1} parent=1 // pred_fallthru
      _
    // Predicated region
    $region18: #{tpu_custom_call.1} parent=1 // pred_check
      _
    $region19: #{tpu_custom_call.1} parent=1 // pred_check_branch
      %65 = sbr.rel (0) target = $region21
    $region20: #{tpu_custom_call.1} parent=1 // pred_region
      _
    $region21: #{tpu_custom_call.1} parent=1 // pred_fallthru
      _
    // Predicated region
    $region22: #{tpu_custom_call.1} parent=1 // pred_check
      _
    $region23: #{tpu_custom_call.1} parent=1 // pred_check_branch
      %67 = sbr.rel (0) target = $region25
    $region24: #{tpu_custom_call.1} parent=1 // pred_region
      %s69 = ssub.s32 4096, 4096
      %70 = vsyncadd [#allocation9], %s69
      %s71 = sshll.u32 [#allocation10], 4
      %s72 = int_to_ptr.vmem [resolvable:$true] %s71
      %77 = dma.hbm_to_vmem [thread:$0]  %s5, 4096, %s72, [#allocation9], 64, 64, 4
    $region25: #{tpu_custom_call.1} parent=1 // pred_fallthru
      _
    // Predicated region
    $region26: #{tpu_custom_call.1} parent=1 // pred_check
      _
    $region27: #{tpu_custom_call.1} parent=1 // pred_check_branch
      %79 = sbr.rel (0) target = $region29
    $region28: #{tpu_custom_call.1} parent=1 // pred_region
      _
    $region29: #{tpu_custom_call.1} parent=1 // pred_fallthru
      _
    // Predicated region
    $region30: #{tpu_custom_call.1} parent=1 // pred_check
      _
    $region31: #{tpu_custom_call.1} parent=1 // pred_check_branch
      %81 = sbr.rel (0) target = $region33
    $region32: #{tpu_custom_call.1} parent=1 // pred_region
      %82 = dma.done [#allocation3], 128
    $region33: #{tpu_custom_call.1} parent=1 // pred_fallthru
      _
    // Predicated region
    $region34: #{tpu_custom_call.1} parent=1 // pred_check
      _
    $region35: #{tpu_custom_call.1} parent=1 // pred_check_branch
      %84 = sbr.rel (0) target = $region37
    $region36: #{tpu_custom_call.1} parent=1 // pred_region
      %85 = dma.done [#allocation6], 128
    $region37: #{tpu_custom_call.1} parent=1 // pred_fallthru
      _
    // Predicated region
    $region38: #{tpu_custom_call.1} parent=1 // pred_check
      _
    $region39: #{tpu_custom_call.1} parent=1 // pred_check_branch
      %87 = sbr.rel (0) target = $region41
    $region40: #{tpu_custom_call.1} parent=1 // pred_region
      %88 = dma.done [#allocation6], 128
    $region41: #{tpu_custom_call.1} parent=1 // pred_fallthru
      _
    // Predicated region
    $region42: #{tpu_custom_call.1} parent=1 // pred_check
      _
    $region43: #{tpu_custom_call.1} parent=1 // pred_check_branch
      %90 = sbr.rel (0) target = $region45
    $region44: #{tpu_custom_call.1} parent=1 // pred_region
      %91 = dma.done [#allocation9], 3072
    $region45: #{tpu_custom_call.1} parent=1 // pred_fallthru
      _
    // Predicated region
    $region46: #{tpu_custom_call.1} parent=1 // pred_check
      _
    $region47: #{tpu_custom_call.1} parent=1 // pred_check_branch
      %93 = sbr.rel (0) target = $region49
    $region48: #{tpu_custom_call.1} parent=1 // pred_region
      %94 = dma.done [#allocation9], 4096
    $region49: #{tpu_custom_call.1} parent=1 // pred_fallthru
      _
    %v96 = vld [vmem:[#allocation2] sm:$0xf]
    %v97 = vld [vmem:[#allocation2 + $0x4] sm:$0xf]
    %v98 = vld [vmem:[#allocation5] sm:$0xf]
    %v99 = vld [vmem:[#allocation5 + $0x4] sm:$0xf]
    %v100 = vld [vmem:[#allocation7] sm:$0xf]
    %v101 = vld [vmem:[#allocation7 + $0x4] sm:$0xf]
    %v104 = vunpack.c.l.b16 %v96
    %v105 = vunpack.c.l.b16 %v97
    %v106 = vpack.c.b16 %v105, %v104
    %v109 = vunpack.c.l.b16 %v98
    %v110 = vunpack.c.l.b16 %v99
    %v111 = vpack.c.b16 %v110, %v109
    %112 = vrot.lane.b32.xlu0 %v111, 32
    %v113 = vpop.permute.xlu0 %112
    %v116 = vunpack.c.l.b16 %v100
    %v117 = vunpack.c.l.b16 %v101
    %v118 = vpack.c.b16 %v117, %v116
    %119 = vrot.lane.b32.xlu0 %v118, 64
    %v120 = vpop.permute.xlu0 %119
    %vm121 = vcmask 261120
    %v124 = vsel %vm121, %v106, %v113
    %vm125 = vcmask 523264
    %v127 = vsel %vm125, %v124, %v120
    %v128 = vld [vmem:[#allocation8] sm:$0xff]
    %v129 = vld [vmem:[#allocation8 + $0x8] sm:$0xff]
    %v130 = vld [vmem:[#allocation8 + $0x10] sm:$0xff]
    %v131 = vld [vmem:[#allocation8 + $0x18] sm:$0xff]
    %v132 = vld [vmem:[#allocation8 + $0x20] sm:$0xff]
    %v133 = vld [vmem:[#allocation8 + $0x28] sm:$0xff]
    %v134 = vld [vmem:[#allocation8 + $0x30] sm:$0xff]
    %v135 = vld [vmem:[#allocation8 + $0x38] sm:$0xff]
    %v136 = vld [vmem:[#allocation8 + $0x40] sm:$0xff]
    %v137 = vld [vmem:[#allocation8 + $0x48] sm:$0xff]
    %v138 = vld [vmem:[#allocation8 + $0x50] sm:$0xff]
    %v139 = vld [vmem:[#allocation8 + $0x58] sm:$0xff]
    %v140 = vld [vmem:[#allocation8 + $0x60] sm:$0xff]
    %v141 = vld [vmem:[#allocation8 + $0x68] sm:$0xff]
    %v142 = vld [vmem:[#allocation8 + $0x70] sm:$0xff]
    %v143 = vld [vmem:[#allocation8 + $0x78] sm:$0xff]
    %v144 = vld [vmem:[#allocation8 + $0x80] sm:$0xff]
    %v145 = vld [vmem:[#allocation8 + $0x88] sm:$0xff]
    %v146 = vld [vmem:[#allocation8 + $0x90] sm:$0xff]
    %v147 = vld [vmem:[#allocation8 + $0x98] sm:$0xff]
    %v148 = vld [vmem:[#allocation8 + $0xa0] sm:$0xff]
    %v149 = vld [vmem:[#allocation8 + $0xa8] sm:$0xff]
    %v150 = vld [vmem:[#allocation8 + $0xb0] sm:$0xff]
    %v151 = vld [vmem:[#allocation8 + $0xb8] sm:$0xff]
    %v152 = vld [vmem:[%s4] sm:$0xf]
    %v154 = vlaneseq
    %v155 = vshrl.u32 %v154, 7
    %v156 = vsub.s32 0, %v155
    %v157 = vrot.slane %v152, %v156
    %v158 = vlaneseq
    %v159 = vshrl.u32 %v158, 7
    %v160 = vsub.s32 1, %v159
    %v161 = vrot.slane %v152, %v160
    %v162 = vlaneseq
    %v163 = vshrl.u32 %v162, 7
    %v164 = vsub.s32 2, %v163
    %v165 = vrot.slane %v152, %v164
    %v166 = vlaneseq
    %v167 = vshrl.u32 %v166, 7
    %v168 = vsub.s32 3, %v167
    %v169 = vrot.slane %v152, %v168
    %v198 = vunpack.c.l.b16 %v128
    %v199 = vunpack.c.h.b16 %v128
    %v200 = vunpack.c.l.b16 %v129
    %v201 = vunpack.c.h.b16 %v129
    %v202 = vunpack.c.l.b16 %v130
    %v203 = vunpack.c.h.b16 %v130
    %v204 = vunpack.c.l.b16 %v131
    %v205 = vunpack.c.h.b16 %v131
    %v206 = vunpack.c.l.b16 %v132
    %v207 = vunpack.c.h.b16 %v132
    %v208 = vunpack.c.l.b16 %v133
    %v209 = vunpack.c.h.b16 %v133
    %v210 = vunpack.c.l.b16 %v134
    %v211 = vunpack.c.h.b16 %v134
    %v212 = vunpack.c.l.b16 %v135
    %v213 = vunpack.c.h.b16 %v135
    %v214 = vunpack.c.l.b16 %v136
    %v215 = vunpack.c.h.b16 %v136
    %v216 = vunpack.c.l.b16 %v137
    %v217 = vunpack.c.h.b16 %v137
    %v218 = vunpack.c.l.b16 %v138
    %v219 = vunpack.c.h.b16 %v138
    %v220 = vunpack.c.l.b16 %v139
    %v221 = vunpack.c.h.b16 %v139
    %v222 = vunpack.c.l.b16 %v140
    %v223 = vunpack.c.h.b16 %v140
    %v224 = vunpack.c.l.b16 %v141
    %v225 = vunpack.c.h.b16 %v141
    %v226 = vunpack.c.l.b16 %v142
    %v227 = vunpack.c.h.b16 %v142
    %v228 = vunpack.c.l.b16 %v143
    %v229 = vunpack.c.h.b16 %v143
    %v230 = vunpack.c.l.b16 %v144
    %v231 = vunpack.c.h.b16 %v144
    %v232 = vunpack.c.l.b16 %v145
    %v233 = vunpack.c.h.b16 %v145
    %v234 = vunpack.c.l.b16 %v146
    %v235 = vunpack.c.h.b16 %v146
    %v236 = vunpack.c.l.b16 %v147
    %v237 = vunpack.c.h.b16 %v147
    %v238 = vunpack.c.l.b16 %v148
    %v239 = vunpack.c.h.b16 %v148
    %v240 = vunpack.c.l.b16 %v149
    %v241 = vunpack.c.h.b16 %v149
    %v242 = vunpack.c.l.b16 %v150
    %v243 = vunpack.c.h.b16 %v150
    %v244 = vunpack.c.l.b16 %v151
    %v245 = vunpack.c.h.b16 %v151
    %v246 = vpack.c.b16 %v202, %v198
    %v247 = vpack.c.b16 %v203, %v199
    %v248 = vpack.c.b16 %v204, %v200
    %v249 = vpack.c.b16 %v205, %v201
    %v250 = vpack.c.b16 %v210, %v206
    %v251 = vpack.c.b16 %v211, %v207
    %v252 = vpack.c.b16 %v212, %v208
    %v253 = vpack.c.b16 %v213, %v209
    %v254 = vpack.c.b16 %v218, %v214
    %v255 = vpack.c.b16 %v219, %v215
    %v256 = vpack.c.b16 %v220, %v216
    %v257 = vpack.c.b16 %v221, %v217
    %v258 = vpack.c.b16 %v226, %v222
    %v259 = vpack.c.b16 %v227, %v223
    %v260 = vpack.c.b16 %v228, %v224
    %v261 = vpack.c.b16 %v229, %v225
    %v262 = vpack.c.b16 %v234, %v230
    %v263 = vpack.c.b16 %v235, %v231
    %v264 = vpack.c.b16 %v236, %v232
    %v265 = vpack.c.b16 %v237, %v233
    %v266 = vpack.c.b16 %v242, %v238
    %v267 = vpack.c.b16 %v243, %v239
    %v268 = vpack.c.b16 %v244, %v240
    %v269 = vpack.c.b16 %v245, %v241
    %vm294 = vcmask 785408
    %v295 = vsel %vm294, %v127, 0
    %297 = vmatprep.subr.bf16.mxu0 %v247
    %298 = vmatpush1.bf16.msra.mxu0 %v246
    %299 = vmatprep.subr.bf16.mxu0 %v251
    %300 = vmatpush1.bf16.msra.mxu0 %v250
    %301 = vmatprep.subr.bf16.mxu0 %v255
    %302 = vmatpush1.bf16.msra.mxu0 %v254
    %303 = vmatprep.subr.bf16.mxu0 %v259
    %304 = vmatpush1.bf16.msra.mxu0 %v258
    %305 = vmatprep.subr.bf16.mxu0 %v263
    %306 = vmatpush1.bf16.msra.mxu0 %v262
    %307 = vmatprep.subr.bf16.mxu0 %v267
    %308 = vmatpush1.bf16.msra.mxu0 %v266
    %309 = vmatprep.subr.bf16.mxu0 0
    %310 = vmatpush1.bf16.msra.mxu0 0
    %311 = vmatprep.subr.bf16.mxu0 0
    %312 = vmatpush1.bf16.msra.mxu0 0
    %313 = vmatprep.subr.bf16.mxu0 0
    %314 = vmatpush1.bf16.msra.mxu0 0
    %315 = vmatprep.subr.bf16.mxu0 0
    %316 = vmatpush1.bf16.msra.mxu0 0
    %317 = vmatprep.subr.bf16.mxu0 0
    %318 = vmatpush1.bf16.msra.mxu0 0
    %319 = vmatprep.subr.bf16.mxu0 0
    %320 = vmatpush1.bf16.msra.mxu0 0
    %321 = vmatprep.subr.bf16.mxu0 0
    %322 = vmatpush1.bf16.msra.mxu0 0
    %323 = vmatprep.subr.bf16.mxu0 0
    %324 = vmatpush1.bf16.msra.mxu0 0
    %325 = vmatprep.subr.bf16.mxu0 0
    %326 = vmatpush1.bf16.msra.mxu0 0
    %327 = vmatprep.subr.bf16.mxu0 0
    %328 = vmatpush1.bf16.msra.mxu0 0
    %329 = vmatprep.mubr.bf16.mxu0 0
    %330 = vmatmul.mubr.bf16.gmra.mrb[0].mxu0 %v295
    %v331 = vpop.f32.mrb[0].mxu0
    %v332 = vadd.f32 %v157, %v331
    %v333 = vpop.f32.mrb[0].mxu0
    %v334 = vadd.f32 %v161, %v333
    %v335 = vpop.f32.mrb[0].mxu0
    %v336 = vadd.f32 %v157, %v335
    %v337 = vpop.f32.mrb[0].mxu0
    %v338 = vadd.f32 %v161, %v337
    %339 = vdwg.mxu0
    %340 = vmatprep.subr.bf16.mxu0 %v249
    %341 = vmatpush1.bf16.msra.mxu0 %v248
    %342 = vmatprep.subr.bf16.mxu0 %v253
    %343 = vmatpush1.bf16.msra.mxu0 %v252
    %344 = vmatprep.subr.bf16.mxu0 %v257
    %345 = vmatpush1.bf16.msra.mxu0 %v256
    %346 = vmatprep.subr.bf16.mxu0 %v261
    %347 = vmatpush1.bf16.msra.mxu0 %v260
    %348 = vmatprep.subr.bf16.mxu0 %v265
    %349 = vmatpush1.bf16.msra.mxu0 %v264
    %350 = vmatprep.subr.bf16.mxu0 %v269
    %351 = vmatpush1.bf16.msra.mxu0 %v268
    %352 = vmatprep.subr.bf16.mxu0 0
    %353 = vmatpush1.bf16.msra.mxu0 0
    %354 = vmatprep.subr.bf16.mxu0 0
    %355 = vmatpush1.bf16.msra.mxu0 0
    %356 = vmatprep.subr.bf16.mxu0 0
    %357 = vmatpush1.bf16.msra.mxu0 0
    %358 = vmatprep.subr.bf16.mxu0 0
    %359 = vmatpush1.bf16.msra.mxu0 0
    %360 = vmatprep.subr.bf16.mxu0 0
    %361 = vmatpush1.bf16.msra.mxu0 0
    %362 = vmatprep.subr.bf16.mxu0 0
    %363 = vmatpush1.bf16.msra.mxu0 0
    %364 = vmatprep.subr.bf16.mxu0 0
    %365 = vmatpush1.bf16.msra.mxu0 0
    %366 = vmatprep.subr.bf16.mxu0 0
    %367 = vmatpush1.bf16.msra.mxu0 0
    %368 = vmatprep.subr.bf16.mxu0 0
    %369 = vmatpush1.bf16.msra.mxu0 0
    %370 = vmatprep.subr.bf16.mxu0 0
    %371 = vmatpush1.bf16.msra.mxu0 0
    %372 = vmatprep.mubr.bf16.mxu0 0
    %373 = vmatmul.mubr.bf16.gmra.mrb[0].mxu0 %v295
    %v374 = vpop.f32.mrb[0].mxu0
    %v375 = vadd.f32 %v165, %v374
    %v376 = vpop.f32.mrb[0].mxu0
    %v377 = vadd.f32 %v169, %v376
    %v378 = vpop.f32.mrb[0].mxu0
    %v379 = vadd.f32 %v165, %v378
    %v380 = vpop.f32.mrb[0].mxu0
    %v381 = vadd.f32 %v169, %v380
    %382 = vdwg.mxu0
    %v383 = vmax.f32 %v332, 0.0
    %v384 = vmax.f32 %v334, 0.0
    %v385 = vmax.f32 %v375, 0.0
    %v386 = vmax.f32 %v377, 0.0
    %v387 = vmax.f32 %v336, 0.0
    %v388 = vmax.f32 %v338, 0.0
    %v389 = vmax.f32 %v379, 0.0
    %v390 = vmax.f32 %v381, 0.0
    %v391 = vpack.c.bf16 %v387, %v383
    %v392 = vpack.c.bf16 %v388, %v384
    %v393 = vpack.c.bf16 %v389, %v385
    %v394 = vpack.c.bf16 %v390, %v386
    %v395 = vld [vmem:[#allocation10] sm:$0xf]
    %v396 = vld [vmem:[#allocation10 + $0x4] sm:$0xf]
    %v397 = vld [vmem:[#allocation10 + $0x8] sm:$0xf]
    %v398 = vld [vmem:[#allocation10 + $0xc] sm:$0xf]
    %v399 = vld [vmem:[#allocation10 + $0x10] sm:$0xf]
    %v400 = vld [vmem:[#allocation10 + $0x14] sm:$0xf]
    %v401 = vld [vmem:[#allocation10 + $0x18] sm:$0xf]
    %v402 = vld [vmem:[#allocation10 + $0x1c] sm:$0xf]
    %v403 = vld [vmem:[#allocation10 + $0x20] sm:$0xf]
    %v404 = vld [vmem:[#allocation10 + $0x24] sm:$0xf]
    %v405 = vld [vmem:[#allocation10 + $0x28] sm:$0xf]
    %v406 = vld [vmem:[#allocation10 + $0x2c] sm:$0xf]
    %v407 = vld [vmem:[#allocation10 + $0x30] sm:$0xf]
    %v408 = vld [vmem:[#allocation10 + $0x34] sm:$0xf]
    %v409 = vld [vmem:[#allocation10 + $0x38] sm:$0xf]
    %v410 = vld [vmem:[#allocation10 + $0x3c] sm:$0xf]
    %v411 = vld [vmem:[#allocation10 + $0x40] sm:$0xf]
    %v412 = vld [vmem:[#allocation10 + $0x44] sm:$0xf]
    %v413 = vld [vmem:[#allocation10 + $0x48] sm:$0xf]
    %v414 = vld [vmem:[#allocation10 + $0x4c] sm:$0xf]
    %v415 = vld [vmem:[#allocation10 + $0x50] sm:$0xf]
    %v416 = vld [vmem:[#allocation10 + $0x54] sm:$0xf]
    %v417 = vld [vmem:[#allocation10 + $0x58] sm:$0xf]
    %v418 = vld [vmem:[#allocation10 + $0x5c] sm:$0xf]
    %v419 = vld [vmem:[#allocation10 + $0x60] sm:$0xf]
    %v420 = vld [vmem:[#allocation10 + $0x64] sm:$0xf]
    %v421 = vld [vmem:[#allocation10 + $0x68] sm:$0xf]
    %v422 = vld [vmem:[#allocation10 + $0x6c] sm:$0xf]
    %v423 = vld [vmem:[#allocation10 + $0x70] sm:$0xf]
    %v424 = vld [vmem:[#allocation10 + $0x74] sm:$0xf]
    %v425 = vld [vmem:[#allocation10 + $0x78] sm:$0xf]
    %v426 = vld [vmem:[#allocation10 + $0x7c] sm:$0xf]
    %v427 = vld [vmem:[#allocation10 + $0x80] sm:$0xf]
    %v428 = vld [vmem:[#allocation10 + $0x84] sm:$0xf]
    %v429 = vld [vmem:[#allocation10 + $0x88] sm:$0xf]
    %v430 = vld [vmem:[#allocation10 + $0x8c] sm:$0xf]
    %v431 = vld [vmem:[#allocation10 + $0x90] sm:$0xf]
    %v432 = vld [vmem:[#allocation10 + $0x94] sm:$0xf]
    %v433 = vld [vmem:[#allocation10 + $0x98] sm:$0xf]
    %v434 = vld [vmem:[#allocation10 + $0x9c] sm:$0xf]
    %v435 = vld [vmem:[#allocation10 + $0xa0] sm:$0xf]
    %v436 = vld [vmem:[#allocation10 + $0xa4] sm:$0xf]
    %v437 = vld [vmem:[#allocation10 + $0xa8] sm:$0xf]
    %v438 = vld [vmem:[#allocation10 + $0xac] sm:$0xf]
    %v439 = vld [vmem:[#allocation10 + $0xb0] sm:$0xf]
    %v440 = vld [vmem:[#allocation10 + $0xb4] sm:$0xf]
    %v441 = vld [vmem:[#allocation10 + $0xb8] sm:$0xf]
    %v442 = vld [vmem:[#allocation10 + $0xbc] sm:$0xf]
    %v443 = vld [vmem:[#allocation10 + $0xc0] sm:$0xf]
    %v444 = vld [vmem:[#allocation10 + $0xc4] sm:$0xf]
    %v445 = vld [vmem:[#allocation10 + $0xc8] sm:$0xf]
    %v446 = vld [vmem:[#allocation10 + $0xcc] sm:$0xf]
    %v447 = vld [vmem:[#allocation10 + $0xd0] sm:$0xf]
    %v448 = vld [vmem:[#allocation10 + $0xd4] sm:$0xf]
    %v449 = vld [vmem:[#allocation10 + $0xd8] sm:$0xf]
    %v450 = vld [vmem:[#allocation10 + $0xdc] sm:$0xf]
    %v451 = vld [vmem:[#allocation10 + $0xe0] sm:$0xf]
    %v452 = vld [vmem:[#allocation10 + $0xe4] sm:$0xf]
    %v453 = vld [vmem:[#allocation10 + $0xe8] sm:$0xf]
    %v454 = vld [vmem:[#allocation10 + $0xec] sm:$0xf]
    %v455 = vld [vmem:[#allocation10 + $0xf0] sm:$0xf]
    %v456 = vld [vmem:[#allocation10 + $0xf4] sm:$0xf]
    %v457 = vld [vmem:[#allocation10 + $0xf8] sm:$0xf]
    %v458 = vld [vmem:[#allocation10 + $0xfc] sm:$0xf]
    %v459 = vld [vmem:[%s6] sm:$0x1]
    %v461 = vlaneseq
    %v462 = vshrl.u32 %v461, 7
    %v463 = vsub.s32 0, %v462
    %v464 = vrot.slane %v459, %v463
    %v530 = vunpack.c.l.b16 %v395
    %v531 = vunpack.c.l.b16 %v396
    %v532 = vunpack.c.l.b16 %v397
    %v533 = vunpack.c.l.b16 %v398
    %v534 = vunpack.c.l.b16 %v399
    %v535 = vunpack.c.l.b16 %v400
    %v536 = vunpack.c.l.b16 %v401
    %v537 = vunpack.c.l.b16 %v402
    %v538 = vunpack.c.l.b16 %v403
    %v539 = vunpack.c.l.b16 %v404
    %v540 = vunpack.c.l.b16 %v405
    %v541 = vunpack.c.l.b16 %v406
    %v542 = vunpack.c.l.b16 %v407
    %v543 = vunpack.c.l.b16 %v408
    %v544 = vunpack.c.l.b16 %v409
    %v545 = vunpack.c.l.b16 %v410
    %v546 = vunpack.c.l.b16 %v411
    %v547 = vunpack.c.l.b16 %v412
    %v548 = vunpack.c.l.b16 %v413
    %v549 = vunpack.c.l.b16 %v414
    %v550 = vunpack.c.l.b16 %v415
    %v551 = vunpack.c.l.b16 %v416
    %v552 = vunpack.c.l.b16 %v417
    %v553 = vunpack.c.l.b16 %v418
    %v554 = vunpack.c.l.b16 %v419
    %v555 = vunpack.c.l.b16 %v420
    %v556 = vunpack.c.l.b16 %v421
    %v557 = vunpack.c.l.b16 %v422
    %v558 = vunpack.c.l.b16 %v423
    %v559 = vunpack.c.l.b16 %v424
    %v560 = vunpack.c.l.b16 %v425
    %v561 = vunpack.c.l.b16 %v426
    %v562 = vunpack.c.l.b16 %v427
    %v563 = vunpack.c.l.b16 %v428
    %v564 = vunpack.c.l.b16 %v429
    %v565 = vunpack.c.l.b16 %v430
    %v566 = vunpack.c.l.b16 %v431
    %v567 = vunpack.c.l.b16 %v432
    %v568 = vunpack.c.l.b16 %v433
    %v569 = vunpack.c.l.b16 %v434
    %v570 = vunpack.c.l.b16 %v435
    %v571 = vunpack.c.l.b16 %v436
    %v572 = vunpack.c.l.b16 %v437
    %v573 = vunpack.c.l.b16 %v438
    %v574 = vunpack.c.l.b16 %v439
    %v575 = vunpack.c.l.b16 %v440
    %v576 = vunpack.c.l.b16 %v441
    %v577 = vunpack.c.l.b16 %v442
    %v578 = vunpack.c.l.b16 %v443
    %v579 = vunpack.c.l.b16 %v444
    %v580 = vunpack.c.l.b16 %v445
    %v581 = vunpack.c.l.b16 %v446
    %v582 = vunpack.c.l.b16 %v447
    %v583 = vunpack.c.l.b16 %v448
    %v584 = vunpack.c.l.b16 %v449
    %v585 = vunpack.c.l.b16 %v450
    %v586 = vunpack.c.l.b16 %v451
    %v587 = vunpack.c.l.b16 %v452
    %v588 = vunpack.c.l.b16 %v453
    %v589 = vunpack.c.l.b16 %v454
    %v590 = vunpack.c.l.b16 %v455
    %v591 = vunpack.c.l.b16 %v456
    %v592 = vunpack.c.l.b16 %v457
    %v593 = vunpack.c.l.b16 %v458
    %v594 = vpack.c.b16 %v531, %v530
    %v595 = vpack.c.b16 %v533, %v532
    %v596 = vpack.c.b16 %v535, %v534
    %v597 = vpack.c.b16 %v537, %v536
    %v598 = vpack.c.b16 %v539, %v538
    %v599 = vpack.c.b16 %v541, %v540
    %v600 = vpack.c.b16 %v543, %v542
    %v601 = vpack.c.b16 %v545, %v544
    %v602 = vpack.c.b16 %v547, %v546
    %v603 = vpack.c.b16 %v549, %v548
    %v604 = vpack.c.b16 %v551, %v550
    %v605 = vpack.c.b16 %v553, %v552
    %v606 = vpack.c.b16 %v555, %v554
    %v607 = vpack.c.b16 %v557, %v556
    %v608 = vpack.c.b16 %v559, %v558
    %v609 = vpack.c.b16 %v561, %v560
    %v610 = vpack.c.b16 %v563, %v562
    %v611 = vpack.c.b16 %v565, %v564
    %v612 = vpack.c.b16 %v567, %v566
    %v613 = vpack.c.b16 %v569, %v568
    %v614 = vpack.c.b16 %v571, %v570
    %v615 = vpack.c.b16 %v573, %v572
    %v616 = vpack.c.b16 %v575, %v574
    %v617 = vpack.c.b16 %v577, %v576
    %v618 = vpack.c.b16 %v579, %v578
    %v619 = vpack.c.b16 %v581, %v580
    %v620 = vpack.c.b16 %v583, %v582
    %v621 = vpack.c.b16 %v585, %v584
    %v622 = vpack.c.b16 %v587, %v586
    %v623 = vpack.c.b16 %v589, %v588
    %v624 = vpack.c.b16 %v591, %v590
    %v625 = vpack.c.b16 %v593, %v592
    %658 = vmatprep.subr.bf16.mxu0 0
    %659 = vmatpush1.bf16.msra.mxu0 %v594
    %660 = vmatprep.subr.bf16.mxu0 0
    %661 = vmatpush1.bf16.msra.mxu0 %v595
    %662 = vmatprep.subr.bf16.mxu0 0
    %663 = vmatpush1.bf16.msra.mxu0 %v596
    %664 = vmatprep.subr.bf16.mxu0 0
    %665 = vmatpush1.bf16.msra.mxu0 %v597
    %666 = vmatprep.subr.bf16.mxu0 0
    %667 = vmatpush1.bf16.msra.mxu0 %v598
    %668 = vmatprep.subr.bf16.mxu0 0
    %669 = vmatpush1.bf16.msra.mxu0 %v599
    %670 = vmatprep.subr.bf16.mxu0 0
    %671 = vmatpush1.bf16.msra.mxu0 %v600
    %672 = vmatprep.subr.bf16.mxu0 0
    %673 = vmatpush1.bf16.msra.mxu0 %v601
    %674 = vmatprep.subr.bf16.mxu0 0
    %675 = vmatpush1.bf16.msra.mxu0 %v602
    %676 = vmatprep.subr.bf16.mxu0 0
    %677 = vmatpush1.bf16.msra.mxu0 %v603
    %678 = vmatprep.subr.bf16.mxu0 0
    %679 = vmatpush1.bf16.msra.mxu0 %v604
    %680 = vmatprep.subr.bf16.mxu0 0
    %681 = vmatpush1.bf16.msra.mxu0 %v605
    %682 = vmatprep.subr.bf16.mxu0 0
    %683 = vmatpush1.bf16.msra.mxu0 %v606
    %684 = vmatprep.subr.bf16.mxu0 0
    %685 = vmatpush1.bf16.msra.mxu0 %v607
    %686 = vmatprep.subr.bf16.mxu0 0
    %687 = vmatpush1.bf16.msra.mxu0 %v608
    %688 = vmatprep.subr.bf16.mxu0 0
    %689 = vmatpush1.bf16.msra.mxu0 %v609
    %690 = vmatprep.mubr.bf16.mxu0 %v392
    %691 = vmatmul.mubr.bf16.gmra.mrb[0].mxu0 %v391
    %v692 = vpop.f32.mrb[0].mxu0
    %v693 = vadd.f32 %v464, %v692
    %v694 = vpop.f32.mrb[0].mxu0
    %v695 = vpop.f32.mrb[0].mxu0
    %v696 = vadd.f32 %v464, %v695
    %v697 = vpop.f32.mrb[0].mxu0
    %698 = vdwg.mxu0
    %699 = vmatprep.subr.bf16.mxu0 0
    %700 = vmatpush1.bf16.msra.mxu0 %v610
    %701 = vmatprep.subr.bf16.mxu0 0
    %702 = vmatpush1.bf16.msra.mxu0 %v611
    %703 = vmatprep.subr.bf16.mxu0 0
    %704 = vmatpush1.bf16.msra.mxu0 %v612
    %705 = vmatprep.subr.bf16.mxu0 0
    %706 = vmatpush1.bf16.msra.mxu0 %v613
    %707 = vmatprep.subr.bf16.mxu0 0
    %708 = vmatpush1.bf16.msra.mxu0 %v614
    %709 = vmatprep.subr.bf16.mxu0 0
    %710 = vmatpush1.bf16.msra.mxu0 %v615
    %711 = vmatprep.subr.bf16.mxu0 0
    %712 = vmatpush1.bf16.msra.mxu0 %v616
    %713 = vmatprep.subr.bf16.mxu0 0
    %714 = vmatpush1.bf16.msra.mxu0 %v617
    %715 = vmatprep.subr.bf16.mxu0 0
    %716 = vmatpush1.bf16.msra.mxu0 %v618
    %717 = vmatprep.subr.bf16.mxu0 0
    %718 = vmatpush1.bf16.msra.mxu0 %v619
    %719 = vmatprep.subr.bf16.mxu0 0
    %720 = vmatpush1.bf16.msra.mxu0 %v620
    %721 = vmatprep.subr.bf16.mxu0 0
    %722 = vmatpush1.bf16.msra.mxu0 %v621
    %723 = vmatprep.subr.bf16.mxu0 0
    %724 = vmatpush1.bf16.msra.mxu0 %v622
    %725 = vmatprep.subr.bf16.mxu0 0
    %726 = vmatpush1.bf16.msra.mxu0 %v623
    %727 = vmatprep.subr.bf16.mxu0 0
    %728 = vmatpush1.bf16.msra.mxu0 %v624
    %729 = vmatprep.subr.bf16.mxu0 0
    %730 = vmatpush1.bf16.msra.mxu0 %v625
    %731 = vmatprep.mubr.bf16.mxu0 %v394
    %732 = vmatmul.mubr.bf16.gmra.mrb[0].mxu0 %v393
    %v733 = vpop.f32.mrb[0].mxu0
    %v734 = vadd.f32 %v693, %v733
    %v735 = vpop.f32.mrb[0].mxu0
    %v736 = vpop.f32.mrb[0].mxu0
    %v737 = vadd.f32 %v696, %v736
    %v738 = vpop.f32.mrb[0].mxu0
    %739 = vdwg.mxu0
    %740 = vst [vmem:[#allocation11] sm:$0xff] %v734
    %741 = vst [vmem:[#allocation11 + $0x8] sm:$0xff] %v737
    // Predicated region
    $region50: #{tpu_custom_call.1} parent=1 // pred_check
      _
    $region51: #{tpu_custom_call.1} parent=1 // pred_check_branch
      %743 = sbr.rel (0) target = $region53
    $region52: #{tpu_custom_call.1} parent=1 // pred_region
      %s745 = ssub.s32 256, 256
      %746 = vsyncadd [#allocation4], %s745
      %s747 = sshll.u32 [#allocation11], 4
      %s748 = int_to_ptr.vmem [resolvable:$true] %s747
      %753 = dma.vmem_to_hbm [thread:$0]  %s748, 256, %s7, [#allocation4], 128, 128, 8
    $region53: #{tpu_custom_call.1} parent=1 // pred_fallthru
      _
    // Predicated region
    $region54: #{tpu_custom_call.1} parent=1 // pred_check
      _
    $region55: #{tpu_custom_call.1} parent=1 // pred_check_branch
      %755 = sbr.rel (0) target = $region57
    $region56: #{tpu_custom_call.1} parent=1 // pred_region
      %756 = dma.done [#allocation4], 256
    $region57: #{tpu_custom_call.1} parent=1 // pred_fallthru
      _
    %757 = vsyncpa [#allocation3], 1
    %758 = vsyncpa [#allocation6], 1
    %759 = vsyncpa [#allocation9], 1
    %760 = vsyncpa [#allocation4], 1

</llo_original>
